<compile_context>
chip_gen: v6e
topology: v6e:2x2x1
jax: 0.10.0
libtpu: 0.0.40
codegen_flags: <defaults>
</compile_context>

<pallas_src>
import functools

import jax
import jax.numpy as jnp
from jax.experimental import pallas as pl
from jax.experimental.pallas import tpu as pltpu

LANE = 128
SUBLANE = 8
PREF_TM = 512      # preferred row tile for the A_hat propagation
PREF_TK = 2048     # preferred node-reduction tile


def _round_up(x, m):
    return ((x + m - 1) // m) * m


def _pad2d(x, rows, cols):
    r, c = x.shape
    return jnp.pad(x, ((0, rows - r), (0, cols - c)))


def _pick_tile(dim, pref):
    """Largest multiple of 128 that divides `dim` and is <= pref."""
    t = min(pref, dim)
    while dim % t:
        t -= LANE
    return t


@functools.lru_cache(maxsize=None)
def _vmem_limit_bytes():
    """Generation-aware scoped-VMEM limit (v5e/v6e: 128MiB phys, v7x: 64MiB)."""
    cap = 64 * 1024 * 1024
    try:
        cap = int(pltpu.get_tpu_info().vmem_capacity_bytes)
    except Exception:
        pass
    return max(32 * 1024 * 1024, min((cap * 3) // 4, 100 * 1024 * 1024))


# ----------------------------------------------------------------------------
# Kernel 1: tiled propagation with fused next-layer weight
#   out = [relu](A @ XW + b) [@ W_next]
# Grid: (rows // tm, nodes // tk); f32 VMEM accumulator; epilogue does the
# bias/ReLU and (optionally) the next layer's H @ W before a single store.
# ----------------------------------------------------------------------------
def _prop_kernel(a_ref, xw_ref, b_ref, *rest, apply_relu, fused):
    if fused:
        wn_ref, o_ref, acc_ref = rest
    else:
        o_ref, acc_ref = rest

    @pl.when(pl.program_id(1) == 0)
    def _():
        acc_ref[...] = jnp.zeros_like(acc_ref)

    acc_ref[...] += jnp.dot(a_ref[...], xw_ref[...],
                            preferred_element_type=jnp.float32)

    @pl.when(pl.program_id(1) == pl.num_programs(1) - 1)
    def _():
        h = acc_ref[...] + b_ref[...]
        if apply_relu:
            h = jnp.maximum(h, 0.0)
        if fused:
            h = jnp.dot(h.astype(wn_ref.dtype), wn_ref[...],
                        preferred_element_type=jnp.float32)
        o_ref[...] = h.astype(o_ref.dtype)


def propagate(a, xw, bias, *, apply_relu, w_next=None, out_dtype=jnp.bfloat16,
              tm=PREF_TM, tk=PREF_TK):
    M, K = a.shape
    K2, Hd = xw.shape
    assert K == K2
    fused = w_next is not None
    Ho = w_next.shape[1] if fused else Hd
    tm = _pick_tile(M, tm)
    tk = _pick_tile(K, tk)
    grid = (M // tm, K // tk)

    flops = 2 * M * Hd * K + (2 * M * Hd * Ho if fused else 0)
    bytes_acc = int(M * K * a.dtype.itemsize + K * Hd * xw.dtype.itemsize
                    + M * Ho * jnp.dtype(out_dtype).itemsize)

    in_specs = [
        pl.BlockSpec((tm, tk), lambda i, k: (i, k)),
        pl.BlockSpec((tk, Hd), lambda i, k: (k, 0)),
        pl.BlockSpec((1, Hd), lambda i, k: (0, 0)),
    ]
    args = [a, xw, bias]
    if fused:
        in_specs.append(pl.BlockSpec((Hd, Ho), lambda i, k: (0, 0)))
        args.append(w_next)

    kernel = functools.partial(_prop_kernel, apply_relu=apply_relu, fused=fused)
    return pl.pallas_call(
        kernel,
        out_shape=jax.ShapeDtypeStruct((M, Ho), out_dtype),
        grid_spec=pltpu.PrefetchScalarGridSpec(
            num_scalar_prefetch=0,
            grid=grid,
            in_specs=in_specs,
            out_specs=pl.BlockSpec((tm, Ho), lambda i, k: (i, 0)),
            scratch_shapes=[pltpu.VMEM((tm, Hd), jnp.float32)],
        ),
        compiler_params=pltpu.CompilerParams(
            dimension_semantics=("parallel", "arbitrary"),
            vmem_limit_bytes=_vmem_limit_bytes(),
        ),
        cost_estimate=pl.CostEstimate(flops=flops, transcendentals=0,
                                      bytes_accessed=bytes_acc),
    )(*args)


# ----------------------------------------------------------------------------
# Kernel 2: fused global_mean_pool (pooling-matrix matmul) + final Linear
#   out[G, C] = (P[G, N] @ H[N, Hd]) @ Wl[Hd, C] + bl
# ----------------------------------------------------------------------------
def _pool_linear_kernel(p_ref, h_ref, wl_ref, bl_ref, o_ref, acc_ref):
    k = pl.program_id(0)

    @pl.when(k == 0)
    def _():
        acc_ref[...] = jnp.zeros_like(acc_ref)

    acc_ref[...] += jnp.dot(p_ref[...], h_ref[...],
                            preferred_element_type=jnp.float32)

    @pl.when(k == pl.num_programs(0) - 1)
    def _():
        # TODO(synk): F.dropout(p=0.5) is identity in eval mode; training-mode
        # dropout (pltpu.prng_*) is not implemented.
        out = jnp.dot(acc_ref[...], wl_ref[...],
                      preferred_element_type=jnp.float32) + bl_ref[...]
        o_ref[...] = out.astype(o_ref.dtype)


def pool_linear(pool_mat, h, wl, bl, *, tk=PREF_TM):
    G, N = pool_mat.shape
    N2, Hd = h.shape
    Hd2, C = wl.shape
    assert N == N2 and Hd == Hd2
    tk = _pick_tile(N, tk)
    grid = (N // tk,)

    flops = 2 * G * N * Hd + 2 * G * Hd * C
    bytes_acc = int(G * N * pool_mat.dtype.itemsize + N * Hd * h.dtype.itemsize
                    + Hd * C * wl.dtype.itemsize + G * C * 4)

    return pl.pallas_call(
        _pool_linear_kernel,
        out_shape=jax.ShapeDtypeStruct((G, C), jnp.float32),
        grid_spec=pltpu.PrefetchScalarGridSpec(
            num_scalar_prefetch=0,
            grid=grid,
            in_specs=[
                pl.BlockSpec((G, tk), lambda k: (0, k)),
                pl.BlockSpec((tk, Hd), lambda k: (k, 0)),
                pl.BlockSpec((Hd, C), lambda k: (0, 0)),
                pl.BlockSpec((1, C), lambda k: (0, 0)),
            ],
            out_specs=pl.BlockSpec((G, C), lambda k: (0, 0)),
            scratch_shapes=[pltpu.VMEM((G, Hd), jnp.float32)],
        ),
        compiler_params=pltpu.CompilerParams(
            dimension_semantics=("arbitrary",),
            vmem_limit_bytes=_vmem_limit_bytes(),
        ),
        cost_estimate=pl.CostEstimate(flops=flops, transcendentals=0,
                                      bytes_accessed=bytes_acc),
    )(pool_mat, h, wl, bl)


# ----------------------------------------------------------------------------
# Kernel 3: whole forward in a single dispatch for small padded problems
# (everything fits in VMEM; no intermediate HBM traffic, one launch).
# ----------------------------------------------------------------------------
def _fused_small_kernel(a_ref, xw1_ref, b1_ref, w2_ref, b2_ref, w3_ref, b3_ref,
                        p_ref, wl_ref, bl_ref, o_ref):
    a = a_ref[...]
    h1 = jnp.maximum(
        jnp.dot(a, xw1_ref[...], preferred_element_type=jnp.float32) + b1_ref[...],
        0.0)
    xw2 = jnp.dot(h1.astype(jnp.bfloat16), w2_ref[...],
                  preferred_element_type=jnp.float32).astype(jnp.bfloat16)
    h2 = jnp.maximum(
        jnp.dot(a, xw2, preferred_element_type=jnp.float32) + b2_ref[...], 0.0)
    xw3 = jnp.dot(h2.astype(jnp.bfloat16), w3_ref[...],
                  preferred_element_type=jnp.float32).astype(jnp.bfloat16)
    h3 = jnp.dot(a, xw3, preferred_element_type=jnp.float32) + b3_ref[...]
    pooled = jnp.dot(p_ref[...], h3, preferred_element_type=jnp.float32)
    # TODO(synk): dropout is identity in eval mode.
    o_ref[...] = jnp.dot(pooled, wl_ref[...],
                         preferred_element_type=jnp.float32) + bl_ref[...]


def _forward_fused_small(a_bf, xw1, b1, w2, b2, w3, b3, p, wl, bl):
    gp, cp = p.shape[0], wl.shape[1]
    args = [a_bf, xw1, b1, w2, b2, w3, b3, p, wl, bl]
    return pl.pallas_call(
        _fused_small_kernel,
        out_shape=jax.ShapeDtypeStruct((gp, cp), jnp.float32),
        grid_spec=pltpu.PrefetchScalarGridSpec(
            num_scalar_prefetch=0,
            grid=(1,),
            in_specs=[pl.BlockSpec(x.shape, lambda i: (0, 0)) for x in args],
            out_specs=pl.BlockSpec((gp, cp), lambda i: (0, 0)),
        ),
        compiler_params=pltpu.CompilerParams(
            dimension_semantics=("arbitrary",),
            vmem_limit_bytes=_vmem_limit_bytes(),
        ),
    )(*args)


# ----------------------------------------------------------------------------
# Glue (plain JAX): adjacency normalization, pooling matrix, params
# ----------------------------------------------------------------------------
def build_norm_adj(edge_index, num_nodes):
    """Dense A_hat with self-loops and D^-1/2 (A+I) D^-1/2 (GCNConv defaults)."""
    src = jnp.concatenate([edge_index[0], jnp.arange(num_nodes)])
    dst = jnp.concatenate([edge_index[1], jnp.arange(num_nodes)])
    deg = jnp.zeros((num_nodes,), jnp.float32).at[dst].add(1.0)
    dinv = jnp.where(deg > 0, 1.0 / jnp.sqrt(deg), 0.0)
    norm = dinv[src] * dinv[dst]
    return jnp.zeros((num_nodes, num_nodes), jnp.float32).at[dst, src].add(norm)


def build_pool_matrix(batch, num_graphs):
    onehot = (batch[None, :] == jnp.arange(num_graphs)[:, None]).astype(jnp.float32)
    counts = jnp.maximum(onehot.sum(axis=1, keepdims=True), 1.0)
    return onehot / counts  # [G, N] f32 (kept f32: exact 1/count)


def glorot(key, shape):
    fan_in, fan_out = shape
    limit = jnp.sqrt(6.0 / (fan_in + fan_out))
    return jax.random.uniform(key, shape, jnp.float32, -limit, limit)


def init_params(key, in_ch, hidden, num_classes):
    ks = jax.random.split(key, 5)
    return {
        "w1": glorot(ks[0], (in_ch, hidden)),
        "b1": jnp.zeros((1, hidden), jnp.float32),
        "w2": glorot(ks[1], (hidden, hidden)),
        "b2": jnp.zeros((1, hidden), jnp.float32),
        "w3": glorot(ks[2], (hidden, hidden)),
        "b3": jnp.zeros((1, hidden), jnp.float32),
        # nn.Linear weight is [out, in]; stored transposed [in, out] for matmul
        "wl": glorot(ks[3], (hidden, num_classes)),
        "bl": jax.random.uniform(ks[4], (1, num_classes), jnp.float32,
                                 -1.0 / jnp.sqrt(hidden), 1.0 / jnp.sqrt(hidden)),
    }


# ----------------------------------------------------------------------------
# Forward pass (Pallas path)
# ----------------------------------------------------------------------------
def gcn_forward(params, x, a_hat, pool_mat, hidden, num_classes,
                allow_fused_small=True):
    num_graphs = pool_mat.shape[0]
    n, in_ch = x.shape
    hp = _round_up(hidden, LANE)
    cp = _round_up(num_classes, LANE)
    gp = _round_up(num_graphs, SUBLANE)

    npad = _round_up(n, LANE)
    if npad > PREF_TM:
        # Pad node count to a multiple of the preferred row tile so the tiled
        # kernels never fall off the tile-divisibility cliff (tm collapsing to 128).
        npad = _round_up(npad, PREF_TM)

    # Pad to aligned shapes; the dominant [N,N] operand is bf16 (f32 MXU acc).
    a_bf = _pad2d(a_hat, npad, npad).astype(jnp.bfloat16)
    p_f32 = _pad2d(pool_mat, gp, npad)                         # f32 pooling matrix

    w1 = _pad2d(params["w1"], in_ch, hp)                       # K=2: stays in XLA
    b1 = _pad2d(params["b1"], 1, hp)
    w2 = _pad2d(params["w2"], hp, hp).astype(jnp.bfloat16)
    b2 = _pad2d(params["b2"], 1, hp)
    w3 = _pad2d(params["w3"], hp, hp).astype(jnp.bfloat16)
    b3 = _pad2d(params["b3"], 1, hp)
    wl = _pad2d(params["wl"], hp, cp)
    bl = _pad2d(params["bl"], 1, cp)

    # layer 1: X @ W1 has K = in_ch = 2 (badly underfills the MXU) -> left to XLA
    xw1 = (_pad2d(x, npad, in_ch) @ w1).astype(jnp.bfloat16)   # [npad, hp]

    small = (npad <= 1024 and hp <= 256 and cp <= 256 and gp <= 64)
    if allow_fused_small and small:
        # Whole problem < a few MiB of VMEM: single dispatch.
        out = _forward_fused_small(a_bf, xw1, b1, w2, b2, w3, b3, p_f32, wl, bl)
        return out[:num_graphs, :num_classes]

    # Tiled path: each propagation fuses the NEXT layer's H @ W into its
    # epilogue, so xw2/xw3 come straight out of the A_hat matmul kernels.
    xw2 = propagate(a_bf, xw1, b1, apply_relu=True, w_next=w2)          # bf16
    xw3 = propagate(a_bf, xw2, b2, apply_relu=True, w_next=w3)          # bf16
    h3 = propagate(a_bf, xw3, b3, apply_relu=False, out_dtype=jnp.float32)
    out = pool_linear(p_f32, h3, wl, bl)                                # [gp, cp] f32
    return out[:num_graphs, :num_classes]


# Reference with matching bf16 quantization points (checks kernel mechanics).
def gcn_forward_ref(params, x, a_hat, pool_mat):
    a_bf = a_hat.astype(jnp.bfloat16)
    xw1 = (x @ params["w1"]).astype(jnp.bfloat16)
    h1 = jnp.maximum(jnp.dot(a_bf, xw1, preferred_element_type=jnp.float32)
                     + params["b1"], 0.0).astype(jnp.bfloat16)
    xw2 = jnp.dot(h1, params["w2"].astype(jnp.bfloat16),
                  preferred_element_type=jnp.float32).astype(jnp.bfloat16)
    h2 = jnp.maximum(jnp.dot(a_bf, xw2, preferred_element_type=jnp.float32)
                     + params["b2"], 0.0).astype(jnp.bfloat16)
    xw3 = jnp.dot(h2, params["w3"].astype(jnp.bfloat16),
                  preferred_element_type=jnp.float32).astype(jnp.bfloat16)
    h3 = jnp.dot(a_bf, xw3, preferred_element_type=jnp.float32) + params["b3"]
    pooled = jnp.dot(pool_mat, h3, preferred_element_type=jnp.float32)
    return jnp.dot(pooled, params["wl"],
                   preferred_element_type=jnp.float32) + params["bl"]


# ----------------------------------------------------------------------------
if __name__ == "__main__":
    in_ch = 2
    hidden = 32
    num_classes = 4

    # ---- Test 1: toy shapes (single-dispatch fused-small path) --------------
    num_nodes = 16
    num_graphs = 2

    def ring_edges(offset, nn):
        s = jnp.arange(nn) + offset
        d = (jnp.arange(nn) + 1) % nn + offset
        return jnp.stack([jnp.concatenate([s, d]), jnp.concatenate([d, s])])

    edge_index = jnp.concatenate([ring_edges(0, 8), ring_edges(8, 8)], axis=1)
    batch = jnp.concatenate([jnp.zeros((8,), jnp.int32), jnp.ones((8,), jnp.int32)])

    key = jax.random.PRNGKey(0)
    k_x, k_p = jax.random.split(key)
    x = jax.random.normal(k_x, (num_nodes, in_ch), jnp.float32)
    params = init_params(k_p, in_ch, hidden, num_classes)

    a_hat = build_norm_adj(edge_index, num_nodes)
    pool_mat = build_pool_matrix(batch, num_graphs)

    out = gcn_forward(params, x, a_hat, pool_mat, hidden, num_classes)
    out = jax.block_until_ready(out)
    ref = gcn_forward_ref(params, x, a_hat, pool_mat)
    assert out.shape == (num_graphs, num_classes)
    assert jnp.allclose(out, ref, atol=2e-2, rtol=2e-2), "fused-small mismatch"

    # ---- Test 2: larger random graph -> tiled multi-step-grid path ----------
    n2, g2, n_edges = 2200, 3, 6000
    k_s, k_d, k_x2, k_b = jax.random.split(jax.random.PRNGKey(1), 4)
    src = jax.random.randint(k_s, (n_edges,), 0, n2)
    dst = jax.random.randint(k_d, (n_edges,), 0, n2)
    edge_index2 = jnp.stack([jnp.concatenate([src, dst]),
                             jnp.concatenate([dst, src])])
    batch2 = jnp.sort(jax.random.randint(k_b, (n2,), 0, g2)).astype(jnp.int32)
    x2 = jax.random.normal(k_x2, (n2, in_ch), jnp.float32)

    a_hat2 = build_norm_adj(edge_index2, n2)
    pool_mat2 = build_pool_matrix(batch2, g2)

    out2 = gcn_forward(params, x2, a_hat2, pool_mat2, hidden, num_classes,
                       allow_fused_small=False)
    out2 = jax.block_until_ready(out2)
    ref2 = gcn_forward_ref(params, x2, a_hat2, pool_mat2)
    assert out2.shape == (g2, num_classes)
    assert jnp.allclose(out2, ref2, atol=3e-2, rtol=3e-2), "tiled-path mismatch"

    print("KERNEL_OK")
</pallas_src>

<mosaic_0001>
module attributes {stable_mosaic.version = 11 : i64} {
  func.func @_fused_small_kernel(%arg0: i32, %arg1: memref<128x128xbf16, #tpu.memory_space<vmem>>, %arg2: memref<128x128xbf16, #tpu.memory_space<vmem>>, %arg3: memref<1x128xf32, #tpu.memory_space<vmem>>, %arg4: memref<128x128xbf16, #tpu.memory_space<vmem>>, %arg5: memref<1x128xf32, #tpu.memory_space<vmem>>, %arg6: memref<128x128xbf16, #tpu.memory_space<vmem>>, %arg7: memref<1x128xf32, #tpu.memory_space<vmem>>, %arg8: memref<8x128xf32, #tpu.memory_space<vmem>>, %arg9: memref<128x128xf32, #tpu.memory_space<vmem>>, %arg10: memref<1x128xf32, #tpu.memory_space<vmem>>, %arg11: memref<8x128xf32, #tpu.memory_space<vmem>>) attributes {dimension_semantics = [#tpu.dimension_semantics<arbitrary>], iteration_bounds = array<i64: 1>, scalar_prefetch = 0 : i64, scratch_operands = 0 : i64, tpu.core_type = #tpu.core_type<tc>, window_params = [{pipeline_mode = #tpu.pipeline_mode<synchronous>, transform_indices = @transform_0, window_bounds = array<i64: 128, 128>}, {pipeline_mode = #tpu.pipeline_mode<synchronous>, transform_indices = @transform_1, window_bounds = array<i64: 128, 128>}, {pipeline_mode = #tpu.pipeline_mode<synchronous>, transform_indices = @transform_2, window_bounds = array<i64: 1, 128>}, {pipeline_mode = #tpu.pipeline_mode<synchronous>, transform_indices = @transform_3, window_bounds = array<i64: 128, 128>}, {pipeline_mode = #tpu.pipeline_mode<synchronous>, transform_indices = @transform_4, window_bounds = array<i64: 1, 128>}, {pipeline_mode = #tpu.pipeline_mode<synchronous>, transform_indices = @transform_5, window_bounds = array<i64: 128, 128>}, {pipeline_mode = #tpu.pipeline_mode<synchronous>, transform_indices = @transform_6, window_bounds = array<i64: 1, 128>}, {pipeline_mode = #tpu.pipeline_mode<synchronous>, transform_indices = @transform_7, window_bounds = array<i64: 8, 128>}, {pipeline_mode = #tpu.pipeline_mode<synchronous>, transform_indices = @transform_8, window_bounds = array<i64: 128, 128>}, {pipeline_mode = #tpu.pipeline_mode<synchronous>, transform_indices = @transform_9, window_bounds = array<i64: 1, 128>}, {pipeline_mode = #tpu.pipeline_mode<synchronous>, transform_indices = @transform_10, window_bounds = array<i64: 8, 128>}]} {
    %c0 = arith.constant 0 : index
    %c0_0 = arith.constant 0 : index
    %0 = vector.load %arg1[%c0, %c0_0] : memref<128x128xbf16, #tpu.memory_space<vmem>>, vector<128x128xbf16>
    %c0_1 = arith.constant 0 : index
    %c0_2 = arith.constant 0 : index
    %1 = vector.load %arg2[%c0_1, %c0_2] : memref<128x128xbf16, #tpu.memory_space<vmem>>, vector<128x128xbf16>
    %cst = arith.constant dense<0.000000e+00> : vector<128x128xf32>
    %2 = tpu.matmul %0, %1, %cst {dimension_numbers = #tpu.dot_dimension_numbers<[1], [0], [0], [1], [0, 0, 1, 1], [], []>} : vector<128x128xbf16>, vector<128x128xbf16>, vector<128x128xf32> -> vector<128x128xf32>
    %c0_3 = arith.constant 0 : index
    %c0_4 = arith.constant 0 : index
    %3 = vector.load %arg3[%c0_3, %c0_4] : memref<1x128xf32, #tpu.memory_space<vmem>>, vector<1x128xf32>
    %4 = vector.broadcast %3 : vector<1x128xf32> to vector<128x128xf32>
    %5 = arith.addf %2, %4 : vector<128x128xf32>
    %cst_5 = arith.constant 0.000000e+00 : f32
    %6 = vector.broadcast %cst_5 : f32 to vector<128x128xf32>
    %7 = arith.maximumf %5, %6 : vector<128x128xf32>
    %8 = arith.truncf %7 : vector<128x128xf32> to vector<128x128xbf16>
    %c0_6 = arith.constant 0 : index
    %c0_7 = arith.constant 0 : index
    %9 = vector.load %arg4[%c0_6, %c0_7] : memref<128x128xbf16, #tpu.memory_space<vmem>>, vector<128x128xbf16>
    %cst_8 = arith.constant dense<0.000000e+00> : vector<128x128xf32>
    %10 = tpu.matmul %8, %9, %cst_8 {dimension_numbers = #tpu.dot_dimension_numbers<[1], [0], [0], [1], [0, 0, 1, 1], [], []>} : vector<128x128xbf16>, vector<128x128xbf16>, vector<128x128xf32> -> vector<128x128xf32>
    %11 = arith.truncf %10 : vector<128x128xf32> to vector<128x128xbf16>
    %cst_9 = arith.constant dense<0.000000e+00> : vector<128x128xf32>
    %12 = tpu.matmul %0, %11, %cst_9 {dimension_numbers = #tpu.dot_dimension_numbers<[1], [0], [0], [1], [0, 0, 1, 1], [], []>} : vector<128x128xbf16>, vector<128x128xbf16>, vector<128x128xf32> -> vector<128x128xf32>
    %c0_10 = arith.constant 0 : index
    %c0_11 = arith.constant 0 : index
    %13 = vector.load %arg5[%c0_10, %c0_11] : memref<1x128xf32, #tpu.memory_space<vmem>>, vector<1x128xf32>
    %14 = vector.broadcast %13 : vector<1x128xf32> to vector<128x128xf32>
    %15 = arith.addf %12, %14 : vector<128x128xf32>
    %cst_12 = arith.constant 0.000000e+00 : f32
    %16 = vector.broadcast %cst_12 : f32 to vector<128x128xf32>
    %17 = arith.maximumf %15, %16 : vector<128x128xf32>
    %18 = arith.truncf %17 : vector<128x128xf32> to vector<128x128xbf16>
    %c0_13 = arith.constant 0 : index
    %c0_14 = arith.constant 0 : index
    %19 = vector.load %arg6[%c0_13, %c0_14] : memref<128x128xbf16, #tpu.memory_space<vmem>>, vector<128x128xbf16>
    %cst_15 = arith.constant dense<0.000000e+00> : vector<128x128xf32>
    %20 = tpu.matmul %18, %19, %cst_15 {dimension_numbers = #tpu.dot_dimension_numbers<[1], [0], [0], [1], [0, 0, 1, 1], [], []>} : vector<128x128xbf16>, vector<128x128xbf16>, vector<128x128xf32> -> vector<128x128xf32>
    %21 = arith.truncf %20 : vector<128x128xf32> to vector<128x128xbf16>
    %cst_16 = arith.constant dense<0.000000e+00> : vector<128x128xf32>
    %22 = tpu.matmul %0, %21, %cst_16 {dimension_numbers = #tpu.dot_dimension_numbers<[1], [0], [0], [1], [0, 0, 1, 1], [], []>} : vector<128x128xbf16>, vector<128x128xbf16>, vector<128x128xf32> -> vector<128x128xf32>
    %c0_17 = arith.constant 0 : index
    %c0_18 = arith.constant 0 : index
    %23 = vector.load %arg7[%c0_17, %c0_18] : memref<1x128xf32, #tpu.memory_space<vmem>>, vector<1x128xf32>
    %24 = vector.broadcast %23 : vector<1x128xf32> to vector<128x128xf32>
    %25 = arith.addf %22, %24 : vector<128x128xf32>
    %c0_19 = arith.constant 0 : index
    %c0_20 = arith.constant 0 : index
    %26 = vector.load %arg8[%c0_19, %c0_20] : memref<8x128xf32, #tpu.memory_space<vmem>>, vector<8x128xf32>
    %cst_21 = arith.constant dense<0.000000e+00> : vector<8x128xf32>
    %27 = tpu.matmul %26, %25, %cst_21 {dimension_numbers = #tpu.dot_dimension_numbers<[1], [0], [0], [1], [0, 0, 1, 1], [], []>} : vector<8x128xf32>, vector<128x128xf32>, vector<8x128xf32> -> vector<8x128xf32>
    %c0_22 = arith.constant 0 : index
    %c0_23 = arith.constant 0 : index
    %28 = vector.load %arg9[%c0_22, %c0_23] : memref<128x128xf32, #tpu.memory_space<vmem>>, vector<128x128xf32>
    %cst_24 = arith.constant dense<0.000000e+00> : vector<8x128xf32>
    %29 = tpu.matmul %27, %28, %cst_24 {dimension_numbers = #tpu.dot_dimension_numbers<[1], [0], [0], [1], [0, 0, 1, 1], [], []>} : vector<8x128xf32>, vector<128x128xf32>, vector<8x128xf32> -> vector<8x128xf32>
    %c0_25 = arith.constant 0 : index
    %c0_26 = arith.constant 0 : index
    %30 = vector.load %arg10[%c0_25, %c0_26] : memref<1x128xf32, #tpu.memory_space<vmem>>, vector<1x128xf32>
    %31 = vector.broadcast %30 : vector<1x128xf32> to vector<8x128xf32>
    %32 = arith.addf %29, %31 : vector<8x128xf32>
    %c0_27 = arith.constant 0 : index
    %c0_28 = arith.constant 0 : index
    %33 = vector.load %arg11[%c0_27, %c0_28] : memref<8x128xf32, #tpu.memory_space<vmem>>, vector<8x128xf32>
    tpu.vector_store %arg11[%c0_27, %c0_28], %32 {strides = array<i32>} : memref<8x128xf32, #tpu.memory_space<vmem>>, vector<8x128xf32>,
    return
  }
  func.func @transform_0(%arg0: i32) -> (i32, i32) {
    %c0_i32 = arith.constant 0 : i32
    %c0_i32_0 = arith.constant 0 : i32
    %c0_i32_1 = arith.constant 0 : i32
    return %c0_i32, %c0_i32_0 : i32, i32
  }
  func.func @transform_1(%arg0: i32) -> (i32, i32) {
    %c0_i32 = arith.constant 0 : i32
    %c0_i32_0 = arith.constant 0 : i32
    %c0_i32_1 = arith.constant 0 : i32
    return %c0_i32, %c0_i32_0 : i32, i32
  }
  func.func @transform_2(%arg0: i32) -> (i32, i32) {
    %c0_i32 = arith.constant 0 : i32
    %c0_i32_0 = arith.constant 0 : i32
    %c0_i32_1 = arith.constant 0 : i32
    return %c0_i32, %c0_i32_0 : i32, i32
  }
  func.func @transform_3(%arg0: i32) -> (i32, i32) {
    %c0_i32 = arith.constant 0 : i32
    %c0_i32_0 = arith.constant 0 : i32
    %c0_i32_1 = arith.constant 0 : i32
    return %c0_i32, %c0_i32_0 : i32, i32
  }
  func.func @transform_4(%arg0: i32) -> (i32, i32) {
    %c0_i32 = arith.constant 0 : i32
    %c0_i32_0 = arith.constant 0 : i32
    %c0_i32_1 = arith.constant 0 : i32
    return %c0_i32, %c0_i32_0 : i32, i32
  }
  func.func @transform_5(%arg0: i32) -> (i32, i32) {
    %c0_i32 = arith.constant 0 : i32
    %c0_i32_0 = arith.constant 0 : i32
    %c0_i32_1 = arith.constant 0 : i32
    return %c0_i32, %c0_i32_0 : i32, i32
  }
  func.func @transform_6(%arg0: i32) -> (i32, i32) {
    %c0_i32 = arith.constant 0 : i32
    %c0_i32_0 = arith.constant 0 : i32
    %c0_i32_1 = arith.constant 0 : i32
    return %c0_i32, %c0_i32_0 : i32, i32
  }
  func.func @transform_7(%arg0: i32) -> (i32, i32) {
    %c0_i32 = arith.constant 0 : i32
    %c0_i32_0 = arith.constant 0 : i32
    %c0_i32_1 = arith.constant 0 : i32
    return %c0_i32, %c0_i32_0 : i32, i32
  }
  func.func @transform_8(%arg0: i32) -> (i32, i32) {
    %c0_i32 = arith.constant 0 : i32
    %c0_i32_0 = arith.constant 0 : i32
    %c0_i32_1 = arith.constant 0 : i32
    return %c0_i32, %c0_i32_0 : i32, i32
  }
  func.func @transform_9(%arg0: i32) -> (i32, i32) {
    %c0_i32 = arith.constant 0 : i32
    %c0_i32_0 = arith.constant 0 : i32
    %c0_i32_1 = arith.constant 0 : i32
    return %c0_i32, %c0_i32_0 : i32, i32
  }
  func.func @transform_10(%arg0: i32) -> (i32, i32) {
    %c0_i32 = arith.constant 0 : i32
    %c0_i32_0 = arith.constant 0 : i32
    %c0_i32_1 = arith.constant 0 : i32
    return %c0_i32, %c0_i32_0 : i32, i32
  }
}

</mosaic_0001>

<llo_original>
// kernel: tpu_custom_call.1
$region0: #{tpu_custom_call.1}
  #allocation0 [shape = 'u32[]', space=smem, size = 0x4, offset = 0x4, fixed_abs, tag = 'smem constant byte address 0x4 - core index']
  #allocation1 [shape = 'u32[144,128]{1,0:T(1,128)}', space=vmem, size = 0x12000, scoped, tag = 'internal scratch']
  %s0 = inlined_call_operand.hbm [shape: bf16[128,128], index: 0, kind: input, shape index: {}]
  %s1 = inlined_call_operand.hbm [shape: bf16[128,128], index: 1, kind: input, shape index: {}]
  %s2 = inlined_call_operand.vmem [shape: f32[1,128], index: 2, kind: input, shape index: {}]
  %s3 = inlined_call_operand.hbm [shape: bf16[128,128], index: 3, kind: input, shape index: {}]
  %s4 = inlined_call_operand.vmem [shape: f32[1,128], index: 4, kind: input, shape index: {}]
  %s5 = inlined_call_operand.hbm [shape: bf16[128,128], index: 5, kind: input, shape index: {}]
  %s6 = inlined_call_operand.vmem [shape: f32[1,128], index: 6, kind: input, shape index: {}]
  %s7 = inlined_call_operand.vmem [shape: f32[8,128], index: 7, kind: input, shape index: {}]
  %s8 = inlined_call_operand.hbm [shape: f32[128,128], index: 8, kind: input, shape index: {}]
  %s9 = inlined_call_operand.vmem [shape: f32[1,128], index: 9, kind: input, shape index: {}]
  %s10 = inlined_call_operand.hbm [shape: f32[8,128], index: 10, kind: output, shape index: {}]
  %s11 = sld [smem:[#allocation0]]
  $region70: #{tpu_custom_call.1} parent=0
    _
  %s13 = ssub.s32 1, %s11
  %s14 = scalar_select 0, %s13, %s11
  $region1: #{tpu_custom_call.1} parent=0
    #allocation2 [shape = 'u8[32768]{0}', space=vmem, size = 0x8000, scoped, tag = 'input window, operand 0, single buffered']
    #allocation3 [shape = 's32[1]{0}', space=sflag, size = 0x4, scoped, tag = 'scoped memory for tpu_custom_call.1']
    #allocation4 [shape = 's32[1]{0}', space=sflag, size = 0x4, scoped, tag = 'scoped memory for tpu_custom_call.1']
    #allocation5 [shape = 'u8[32768]{0}', space=vmem, size = 0x8000, scoped, tag = 'input window, operand 1, single buffered']
    #allocation6 [shape = 's32[1]{0}', space=sflag, size = 0x4, scoped, tag = 'scoped memory for tpu_custom_call.1']
    #allocation7 [shape = 'u8[32768]{0}', space=vmem, size = 0x8000, scoped, tag = 'input window, operand 3, single buffered']
    #allocation8 [shape = 'u8[32768]{0}', space=vmem, size = 0x8000, scoped, tag = 'input window, operand 5, single buffered']
    #allocation9 [shape = 's32[1]{0}', space=sflag, size = 0x4, scoped, tag = 'scoped memory for tpu_custom_call.1']
    #allocation10 [shape = 'u8[65536]{0}', space=vmem, size = 0x10000, scoped, tag = 'input window, operand 8, single buffered']
    #allocation11 [shape = 'u8[4096]{0}', space=vmem, size = 0x1000, scoped, tag = 'output window, operand 0, single buffered']
    %15 = vsyncpa [#allocation3], 0
    %16 = vsyncpa [#allocation6], 0
    %17 = vsyncpa [#allocation9], 0
    %18 = vsyncpa [#allocation4], 0
    // Predicated region
    $region2: #{tpu_custom_call.1} parent=1 // pred_check
      _
    $region3: #{tpu_custom_call.1} parent=1 // pred_check_branch
      %20 = sbr.rel (0) target = $region5
    $region4: #{tpu_custom_call.1} parent=1 // pred_region
      %s22 = ssub.s32 1024, 1024
      %23 = vsyncadd [#allocation3], %s22
      %s24 = sshll.u32 [#allocation2], 4
      %s25 = int_to_ptr.vmem [resolvable:$true] %s24
      %30 = dma.hbm_to_vmem [thread:$0]  %s0, 1024, %s25, [#allocation3], 64, 64, 4
    $region5: #{tpu_custom_call.1} parent=1 // pred_fallthru
      _
    // Predicated region
    $region6: #{tpu_custom_call.1} parent=1 // pred_check
      _
    $region7: #{tpu_custom_call.1} parent=1 // pred_check_branch
      %32 = sbr.rel (0) target = $region9
    $region8: #{tpu_custom_call.1} parent=1 // pred_region
      %s34 = ssub.s32 1024, 1024
      %35 = vsyncadd [#allocation6], %s34
      %s36 = sshll.u32 [#allocation5], 4
      %s37 = int_to_ptr.vmem [resolvable:$true] %s36
      %42 = dma.hbm_to_vmem [thread:$0]  %s1, 1024, %s37, [#allocation6], 64, 64, 4
    $region9: #{tpu_custom_call.1} parent=1 // pred_fallthru
      _
    // Predicated region
    $region10: #{tpu_custom_call.1} parent=1 // pred_check
      _
    $region11: #{tpu_custom_call.1} parent=1 // pred_check_branch
      %44 = sbr.rel (0) target = $region13
    $region12: #{tpu_custom_call.1} parent=1 // pred_region
      _
    $region13: #{tpu_custom_call.1} parent=1 // pred_fallthru
      _
    // Predicated region
    $region14: #{tpu_custom_call.1} parent=1 // pred_check
      _
    $region15: #{tpu_custom_call.1} parent=1 // pred_check_branch
      %46 = sbr.rel (0) target = $region17
    $region16: #{tpu_custom_call.1} parent=1 // pred_region
      %s48 = ssub.s32 1024, 1024
      %49 = vsyncadd [#allocation6], %s48
      %s50 = sshll.u32 [#allocation7], 4
      %s51 = int_to_ptr.vmem [resolvable:$true] %s50
      %56 = dma.hbm_to_vmem [thread:$0]  %s3, 1024, %s51, [#allocation6], 64, 64, 4
    $region17: #{tpu_custom_call.1} parent=1 // pred_fallthru
      _
    // Predicated region
    $region18: #{tpu_custom_call.1} parent=1 // pred_check
      _
    $region19: #{tpu_custom_call.1} parent=1 // pred_check_branch
      %58 = sbr.rel (0) target = $region21
    $region20: #{tpu_custom_call.1} parent=1 // pred_region
      _
    $region21: #{tpu_custom_call.1} parent=1 // pred_fallthru
      _
    // Predicated region
    $region22: #{tpu_custom_call.1} parent=1 // pred_check
      _
    $region23: #{tpu_custom_call.1} parent=1 // pred_check_branch
      %60 = sbr.rel (0) target = $region25
    $region24: #{tpu_custom_call.1} parent=1 // pred_region
      %s62 = ssub.s32 1024, 1024
      %63 = vsyncadd [#allocation9], %s62
      %s64 = sshll.u32 [#allocation8], 4
      %s65 = int_to_ptr.vmem [resolvable:$true] %s64
      %70 = dma.hbm_to_vmem [thread:$0]  %s5, 1024, %s65, [#allocation9], 64, 64, 4
    $region25: #{tpu_custom_call.1} parent=1 // pred_fallthru
      _
    // Predicated region
    $region26: #{tpu_custom_call.1} parent=1 // pred_check
      _
    $region27: #{tpu_custom_call.1} parent=1 // pred_check_branch
      %72 = sbr.rel (0) target = $region29
    $region28: #{tpu_custom_call.1} parent=1 // pred_region
      _
    $region29: #{tpu_custom_call.1} parent=1 // pred_fallthru
      _
    // Predicated region
    $region30: #{tpu_custom_call.1} parent=1 // pred_check
      _
    $region31: #{tpu_custom_call.1} parent=1 // pred_check_branch
      %74 = sbr.rel (0) target = $region33
    $region32: #{tpu_custom_call.1} parent=1 // pred_region
      _
    $region33: #{tpu_custom_call.1} parent=1 // pred_fallthru
      _
    // Predicated region
    $region34: #{tpu_custom_call.1} parent=1 // pred_check
      _
    $region35: #{tpu_custom_call.1} parent=1 // pred_check_branch
      %76 = sbr.rel (0) target = $region37
    $region36: #{tpu_custom_call.1} parent=1 // pred_region
      %s78 = ssub.s32 2048, 2048
      %79 = vsyncadd [#allocation9], %s78
      %s80 = sshll.u32 [#allocation10], 4
      %s81 = int_to_ptr.vmem [resolvable:$true] %s80
      %86 = dma.hbm_to_vmem [thread:$0]  %s8, 2048, %s81, [#allocation9], 128, 128, 8
    $region37: #{tpu_custom_call.1} parent=1 // pred_fallthru
      _
    // Predicated region
    $region38: #{tpu_custom_call.1} parent=1 // pred_check
      _
    $region39: #{tpu_custom_call.1} parent=1 // pred_check_branch
      %88 = sbr.rel (0) target = $region41
    $region40: #{tpu_custom_call.1} parent=1 // pred_region
      _
    $region41: #{tpu_custom_call.1} parent=1 // pred_fallthru
      _
    // Predicated region
    $region42: #{tpu_custom_call.1} parent=1 // pred_check
      _
    $region43: #{tpu_custom_call.1} parent=1 // pred_check_branch
      %90 = sbr.rel (0) target = $region45
    $region44: #{tpu_custom_call.1} parent=1 // pred_region
      %91 = dma.done [#allocation3], 1024
    $region45: #{tpu_custom_call.1} parent=1 // pred_fallthru
      _
    // Predicated region
    $region46: #{tpu_custom_call.1} parent=1 // pred_check
      _
    $region47: #{tpu_custom_call.1} parent=1 // pred_check_branch
      %93 = sbr.rel (0) target = $region49
    $region48: #{tpu_custom_call.1} parent=1 // pred_region
      %94 = dma.done [#allocation6], 1024
    $region49: #{tpu_custom_call.1} parent=1 // pred_fallthru
      _
    // Predicated region
    $region50: #{tpu_custom_call.1} parent=1 // pred_check
      _
    $region51: #{tpu_custom_call.1} parent=1 // pred_check_branch
      %96 = sbr.rel (0) target = $region53
    $region52: #{tpu_custom_call.1} parent=1 // pred_region
      %97 = dma.done [#allocation6], 1024
    $region53: #{tpu_custom_call.1} parent=1 // pred_fallthru
      _
    // Predicated region
    $region54: #{tpu_custom_call.1} parent=1 // pred_check
      _
    $region55: #{tpu_custom_call.1} parent=1 // pred_check_branch
      %99 = sbr.rel (0) target = $region57
    $region56: #{tpu_custom_call.1} parent=1 // pred_region
      %100 = dma.done [#allocation9], 1024
    $region57: #{tpu_custom_call.1} parent=1 // pred_fallthru
      _
    // Predicated region
    $region58: #{tpu_custom_call.1} parent=1 // pred_check
      _
    $region59: #{tpu_custom_call.1} parent=1 // pred_check_branch
      %102 = sbr.rel (0) target = $region61
    $region60: #{tpu_custom_call.1} parent=1 // pred_region
      %103 = dma.done [#allocation9], 2048
    $region61: #{tpu_custom_call.1} parent=1 // pred_fallthru
      _
    %v105 = vld [vmem:[#allocation2] sm:$0xf]
    %v106 = vld [vmem:[#allocation2 + $0x4] sm:$0xf]
    %v107 = vld [vmem:[#allocation2 + $0x8] sm:$0xf]
    %v108 = vld [vmem:[#allocation2 + $0xc] sm:$0xf]
    %v109 = vld [vmem:[#allocation2 + $0x10] sm:$0xf]
    %v110 = vld [vmem:[#allocation2 + $0x14] sm:$0xf]
    %v111 = vld [vmem:[#allocation2 + $0x18] sm:$0xf]
    %v112 = vld [vmem:[#allocation2 + $0x1c] sm:$0xf]
    %v113 = vld [vmem:[#allocation2 + $0x20] sm:$0xf]
    %v114 = vld [vmem:[#allocation2 + $0x24] sm:$0xf]
    %v115 = vld [vmem:[#allocation2 + $0x28] sm:$0xf]
    %v116 = vld [vmem:[#allocation2 + $0x2c] sm:$0xf]
    %v117 = vld [vmem:[#allocation2 + $0x30] sm:$0xf]
    %v118 = vld [vmem:[#allocation2 + $0x34] sm:$0xf]
    %v119 = vld [vmem:[#allocation2 + $0x38] sm:$0xf]
    %v120 = vld [vmem:[#allocation2 + $0x3c] sm:$0xf]
    %v121 = vld [vmem:[#allocation5] sm:$0xf]
    %v122 = vld [vmem:[#allocation5 + $0x4] sm:$0xf]
    %v123 = vld [vmem:[#allocation5 + $0x8] sm:$0xf]
    %v124 = vld [vmem:[#allocation5 + $0xc] sm:$0xf]
    %v125 = vld [vmem:[#allocation5 + $0x10] sm:$0xf]
    %v126 = vld [vmem:[#allocation5 + $0x14] sm:$0xf]
    %v127 = vld [vmem:[#allocation5 + $0x18] sm:$0xf]
    %v128 = vld [vmem:[#allocation5 + $0x1c] sm:$0xf]
    %v129 = vld [vmem:[#allocation5 + $0x20] sm:$0xf]
    %v130 = vld [vmem:[#allocation5 + $0x24] sm:$0xf]
    %v131 = vld [vmem:[#allocation5 + $0x28] sm:$0xf]
    %v132 = vld [vmem:[#allocation5 + $0x2c] sm:$0xf]
    %v133 = vld [vmem:[#allocation5 + $0x30] sm:$0xf]
    %v134 = vld [vmem:[#allocation5 + $0x34] sm:$0xf]
    %v135 = vld [vmem:[#allocation5 + $0x38] sm:$0xf]
    %v136 = vld [vmem:[#allocation5 + $0x3c] sm:$0xf]
    %v137 = vld [vmem:[%s2] sm:$0x1]
    %v139 = vlaneseq
    %v140 = vshrl.u32 %v139, 7
    %v141 = vsub.s32 0, %v140
    %v142 = vrot.slane %v137, %v141
    %v160 = vunpack.c.l.b16 %v105
    %v161 = vunpack.c.l.b16 %v106
    %v162 = vunpack.c.l.b16 %v107
    %v163 = vunpack.c.l.b16 %v108
    %v164 = vunpack.c.l.b16 %v109
    %v165 = vunpack.c.l.b16 %v110
    %v166 = vunpack.c.l.b16 %v111
    %v167 = vunpack.c.l.b16 %v112
    %v168 = vunpack.c.l.b16 %v113
    %v169 = vunpack.c.l.b16 %v114
    %v170 = vunpack.c.l.b16 %v115
    %v171 = vunpack.c.l.b16 %v116
    %v172 = vunpack.c.l.b16 %v117
    %v173 = vunpack.c.l.b16 %v118
    %v174 = vunpack.c.l.b16 %v119
    %v175 = vunpack.c.l.b16 %v120
    %v176 = vpack.c.b16 %v161, %v160
    %v177 = vpack.c.b16 %v163, %v162
    %v178 = vpack.c.b16 %v165, %v164
    %v179 = vpack.c.b16 %v167, %v166
    %v180 = vpack.c.b16 %v169, %v168
    %v181 = vpack.c.b16 %v171, %v170
    %v182 = vpack.c.b16 %v173, %v172
    %v183 = vpack.c.b16 %v175, %v174
    %v208 = vunpack.c.l.b16 %v121
    %v209 = vunpack.c.l.b16 %v122
    %v210 = vunpack.c.l.b16 %v123
    %v211 = vunpack.c.l.b16 %v124
    %v212 = vunpack.c.l.b16 %v125
    %v213 = vunpack.c.l.b16 %v126
    %v214 = vunpack.c.l.b16 %v127
    %v215 = vunpack.c.l.b16 %v128
    %v216 = vunpack.c.l.b16 %v129
    %v217 = vunpack.c.l.b16 %v130
    %v218 = vunpack.c.l.b16 %v131
    %v219 = vunpack.c.l.b16 %v132
    %v220 = vunpack.c.l.b16 %v133
    %v221 = vunpack.c.l.b16 %v134
    %v222 = vunpack.c.l.b16 %v135
    %v223 = vunpack.c.l.b16 %v136
    %v224 = vpack.c.b16 %v209, %v208
    %v225 = vpack.c.b16 %v211, %v210
    %v226 = vpack.c.b16 %v213, %v212
    %v227 = vpack.c.b16 %v215, %v214
    %v228 = vpack.c.b16 %v217, %v216
    %v229 = vpack.c.b16 %v219, %v218
    %v230 = vpack.c.b16 %v221, %v220
    %v231 = vpack.c.b16 %v223, %v222
    %240 = vmatprep.subr.bf16.mxu0 0
    %241 = vmatpush1.bf16.msra.mxu0 %v231
    %242 = vmatprep.subr.bf16.mxu0 0
    %243 = vmatpush1.bf16.msra.mxu0 %v230
    %244 = vmatprep.subr.bf16.mxu0 0
    %245 = vmatpush1.bf16.msra.mxu0 %v229
    %246 = vmatprep.subr.bf16.mxu0 0
    %247 = vmatpush1.bf16.msra.mxu0 %v228
    %248 = vmatprep.subr.bf16.mxu0 0
    %249 = vmatpush1.bf16.msra.mxu0 %v227
    %250 = vmatprep.subr.bf16.mxu0 0
    %251 = vmatpush1.bf16.msra.mxu0 %v226
    %252 = vmatprep.subr.bf16.mxu0 0
    %253 = vmatpush1.bf16.msra.mxu0 %v225
    %254 = vmatprep.subr.bf16.mxu0 0
    %255 = vmatpush1.bf16.msra.mxu0 %v224
    %256 = vmatprep.subr.bf16.mxu0 0
    %257 = vmatpush2.bf16.msra.mxu0 0
    %258 = vmatprep.subr.bf16.mxu0 0
    %259 = vmatpush2.bf16.msra.mxu0 0
    %260 = vmatprep.subr.bf16.mxu0 0
    %261 = vmatpush2.bf16.msra.mxu0 0
    %262 = vmatprep.subr.bf16.mxu0 0
    %263 = vmatpush2.bf16.msra.mxu0 0
    %264 = vmatprep.subr.bf16.mxu0 0
    %265 = vmatpush2.bf16.msra.mxu0 0
    %266 = vmatprep.subr.bf16.mxu0 0
    %267 = vmatpush2.bf16.msra.mxu0 0
    %268 = vmatprep.subr.bf16.mxu0 0
    %269 = vmatpush2.bf16.msra.mxu0 0
    %270 = vmatprep.subr.bf16.mxu0 0
    %271 = vmatpush2.bf16.msra.mxu0 0
    %272 = vmatprep.mubr.bf16.mxu0 0
    %273 = vmatmul.mubr.bf16.gmra.mxu0 %v176
    %v274 = vpop.f32.mrf.mxu0
    %v275 = vadd.f32 %v142, %v274
    %v276 = vpop.f32.mrf.mxu0
    %v277 = vpop.f32.mrf.mxu0
    %v278 = vadd.f32 %v142, %v277
    %v279 = vpop.f32.mrf.mxu0
    %280 = vmatprep.mubr.bf16.mxu0 0
    %281 = vmatmul.mubr.bf16.gmra.mxu0 %v177
    %v282 = vpop.f32.mrf.mxu0
    %v283 = vadd.f32 %v142, %v282
    %v284 = vpop.f32.mrf.mxu0
    %v285 = vpop.f32.mrf.mxu0
    %v286 = vadd.f32 %v142, %v285
    %v287 = vpop.f32.mrf.mxu0
    %288 = vmatprep.mubr.bf16.mxu0 0
    %289 = vmatmul.mubr.bf16.gmra.mxu0 %v178
    %v290 = vpop.f32.mrf.mxu0
    %v291 = vadd.f32 %v142, %v290
    %v292 = vpop.f32.mrf.mxu0
    %v293 = vpop.f32.mrf.mxu0
    %v294 = vadd.f32 %v142, %v293
    %v295 = vpop.f32.mrf.mxu0
    %296 = vmatprep.mubr.bf16.mxu0 0
    %297 = vmatmul.mubr.bf16.gmra.mxu0 %v179
    %v298 = vpop.f32.mrf.mxu0
    %v299 = vadd.f32 %v142, %v298
    %v300 = vpop.f32.mrf.mxu0
    %v301 = vpop.f32.mrf.mxu0
    %v302 = vadd.f32 %v142, %v301
    %v303 = vpop.f32.mrf.mxu0
    %304 = vmatprep.mubr.bf16.mxu0 0
    %305 = vmatmul.mubr.bf16.gmra.mxu0 %v180
    %v306 = vpop.f32.mrf.mxu0
    %v307 = vadd.f32 %v142, %v306
    %v308 = vpop.f32.mrf.mxu0
    %v309 = vpop.f32.mrf.mxu0
    %v310 = vadd.f32 %v142, %v309
    %v311 = vpop.f32.mrf.mxu0
    %312 = vmatprep.mubr.bf16.mxu0 0
    %313 = vmatmul.mubr.bf16.gmra.mxu0 %v181
    %v314 = vpop.f32.mrf.mxu0
    %v315 = vadd.f32 %v142, %v314
    %v316 = vpop.f32.mrf.mxu0
    %v317 = vpop.f32.mrf.mxu0
    %v318 = vadd.f32 %v142, %v317
    %v319 = vpop.f32.mrf.mxu0
    %320 = vmatprep.mubr.bf16.mxu0 0
    %321 = vmatmul.mubr.bf16.gmra.mxu0 %v182
    %v322 = vpop.f32.mrf.mxu0
    %v323 = vadd.f32 %v142, %v322
    %v324 = vpop.f32.mrf.mxu0
    %v325 = vpop.f32.mrf.mxu0
    %v326 = vadd.f32 %v142, %v325
    %v327 = vpop.f32.mrf.mxu0
    %328 = vmatprep.mubr.bf16.mxu0 0
    %329 = vmatmul.mubr.bf16.gmra.mxu0 %v183
    %v330 = vpop.f32.mrf.mxu0
    %v331 = vadd.f32 %v142, %v330
    %v332 = vpop.f32.mrf.mxu0
    %v333 = vpop.f32.mrf.mxu0
    %v334 = vadd.f32 %v142, %v333
    %v335 = vpop.f32.mrf.mxu0
    %336 = vdwg.mxu0
    %v337 = vmax.f32 %v275, 0.0
    %v338 = vmax.f32 %v278, 0.0
    %v339 = vmax.f32 %v283, 0.0
    %v340 = vmax.f32 %v286, 0.0
    %v341 = vmax.f32 %v291, 0.0
    %v342 = vmax.f32 %v294, 0.0
    %v343 = vmax.f32 %v299, 0.0
    %v344 = vmax.f32 %v302, 0.0
    %v345 = vmax.f32 %v307, 0.0
    %v346 = vmax.f32 %v310, 0.0
    %v347 = vmax.f32 %v315, 0.0
    %v348 = vmax.f32 %v318, 0.0
    %v349 = vmax.f32 %v323, 0.0
    %v350 = vmax.f32 %v326, 0.0
    %v351 = vmax.f32 %v331, 0.0
    %v352 = vmax.f32 %v334, 0.0
    %v353 = vpack.c.bf16 %v338, %v337
    %v354 = vpack.c.bf16 %v340, %v339
    %v355 = vpack.c.bf16 %v342, %v341
    %v356 = vpack.c.bf16 %v344, %v343
    %v357 = vpack.c.bf16 %v346, %v345
    %v358 = vpack.c.bf16 %v348, %v347
    %v359 = vpack.c.bf16 %v350, %v349
    %v360 = vpack.c.bf16 %v352, %v351
    %v361 = vld [vmem:[#allocation7] sm:$0xf]
    %v362 = vld [vmem:[#allocation7 + $0x4] sm:$0xf]
    %v363 = vld [vmem:[#allocation7 + $0x8] sm:$0xf]
    %v364 = vld [vmem:[#allocation7 + $0xc] sm:$0xf]
    %v365 = vld [vmem:[#allocation7 + $0x10] sm:$0xf]
    %v366 = vld [vmem:[#allocation7 + $0x14] sm:$0xf]
    %v367 = vld [vmem:[#allocation7 + $0x18] sm:$0xf]
    %v368 = vld [vmem:[#allocation7 + $0x1c] sm:$0xf]
    %v369 = vld [vmem:[#allocation7 + $0x20] sm:$0xf]
    %v370 = vld [vmem:[#allocation7 + $0x24] sm:$0xf]
    %v371 = vld [vmem:[#allocation7 + $0x28] sm:$0xf]
    %v372 = vld [vmem:[#allocation7 + $0x2c] sm:$0xf]
    %v373 = vld [vmem:[#allocation7 + $0x30] sm:$0xf]
    %v374 = vld [vmem:[#allocation7 + $0x34] sm:$0xf]
    %v375 = vld [vmem:[#allocation7 + $0x38] sm:$0xf]
    %v376 = vld [vmem:[#allocation7 + $0x3c] sm:$0xf]
    %v393 = vunpack.c.l.b16 %v361
    %v394 = vunpack.c.l.b16 %v362
    %v395 = vunpack.c.l.b16 %v363
    %v396 = vunpack.c.l.b16 %v364
    %v397 = vunpack.c.l.b16 %v365
    %v398 = vunpack.c.l.b16 %v366
    %v399 = vunpack.c.l.b16 %v367
    %v400 = vunpack.c.l.b16 %v368
    %v401 = vunpack.c.l.b16 %v369
    %v402 = vunpack.c.l.b16 %v370
    %v403 = vunpack.c.l.b16 %v371
    %v404 = vunpack.c.l.b16 %v372
    %v405 = vunpack.c.l.b16 %v373
    %v406 = vunpack.c.l.b16 %v374
    %v407 = vunpack.c.l.b16 %v375
    %v408 = vunpack.c.l.b16 %v376
    %v409 = vpack.c.b16 %v394, %v393
    %v410 = vpack.c.b16 %v396, %v395
    %v411 = vpack.c.b16 %v398, %v397
    %v412 = vpack.c.b16 %v400, %v399
    %v413 = vpack.c.b16 %v402, %v401
    %v414 = vpack.c.b16 %v404, %v403
    %v415 = vpack.c.b16 %v406, %v405
    %v416 = vpack.c.b16 %v408, %v407
    %425 = vmatprep.subr.bf16.mxu0 0
    %426 = vmatpush1.bf16.msra.mxu0 %v416
    %427 = vmatprep.subr.bf16.mxu0 0
    %428 = vmatpush1.bf16.msra.mxu0 %v415
    %429 = vmatprep.subr.bf16.mxu0 0
    %430 = vmatpush1.bf16.msra.mxu0 %v414
    %431 = vmatprep.subr.bf16.mxu0 0
    %432 = vmatpush1.bf16.msra.mxu0 %v413
    %433 = vmatprep.subr.bf16.mxu0 0
    %434 = vmatpush1.bf16.msra.mxu0 %v412
    %435 = vmatprep.subr.bf16.mxu0 0
    %436 = vmatpush1.bf16.msra.mxu0 %v411
    %437 = vmatprep.subr.bf16.mxu0 0
    %438 = vmatpush1.bf16.msra.mxu0 %v410
    %439 = vmatprep.subr.bf16.mxu0 0
    %440 = vmatpush1.bf16.msra.mxu0 %v409
    %441 = vmatprep.subr.bf16.mxu0 0
    %442 = vmatpush2.bf16.msra.mxu0 0
    %443 = vmatprep.subr.bf16.mxu0 0
    %444 = vmatpush2.bf16.msra.mxu0 0
    %445 = vmatprep.subr.bf16.mxu0 0
    %446 = vmatpush2.bf16.msra.mxu0 0
    %447 = vmatprep.subr.bf16.mxu0 0
    %448 = vmatpush2.bf16.msra.mxu0 0
    %449 = vmatprep.subr.bf16.mxu0 0
    %450 = vmatpush2.bf16.msra.mxu0 0
    %451 = vmatprep.subr.bf16.mxu0 0
    %452 = vmatpush2.bf16.msra.mxu0 0
    %453 = vmatprep.subr.bf16.mxu0 0
    %454 = vmatpush2.bf16.msra.mxu0 0
    %455 = vmatprep.subr.bf16.mxu0 0
    %456 = vmatpush2.bf16.msra.mxu0 0
    %457 = vmatprep.mubr.bf16.mxu0 0
    %458 = vmatmul.mubr.bf16.gmra.mxu0 %v353
    %v459 = vpop.f32.mrf.mxu0
    %v460 = vadd.f32 0.0, %v459
    %v461 = vpop.f32.mrf.mxu0
    %v462 = vpop.f32.mrf.mxu0
    %v463 = vadd.f32 0.0, %v462
    %v464 = vpop.f32.mrf.mxu0
    %465 = vmatprep.mubr.bf16.mxu0 0
    %466 = vmatmul.mubr.bf16.gmra.mxu0 %v354
    %v467 = vpop.f32.mrf.mxu0
    %v468 = vadd.f32 0.0, %v467
    %v469 = vpop.f32.mrf.mxu0
    %v470 = vpop.f32.mrf.mxu0
    %v471 = vadd.f32 0.0, %v470
    %v472 = vpop.f32.mrf.mxu0
    %473 = vmatprep.mubr.bf16.mxu0 0
    %474 = vmatmul.mubr.bf16.gmra.mxu0 %v355
    %v475 = vpop.f32.mrf.mxu0
    %v476 = vadd.f32 0.0, %v475
    %v477 = vpop.f32.mrf.mxu0
    %v478 = vpop.f32.mrf.mxu0
    %v479 = vadd.f32 0.0, %v478
    %v480 = vpop.f32.mrf.mxu0
    %481 = vmatprep.mubr.bf16.mxu0 0
    %482 = vmatmul.mubr.bf16.gmra.mxu0 %v356
    %v483 = vpop.f32.mrf.mxu0
    %v484 = vadd.f32 0.0, %v483
    %v485 = vpop.f32.mrf.mxu0
    %v486 = vpop.f32.mrf.mxu0
    %v487 = vadd.f32 0.0, %v486
    %v488 = vpop.f32.mrf.mxu0
    %489 = vmatprep.mubr.bf16.mxu0 0
    %490 = vmatmul.mubr.bf16.gmra.mxu0 %v357
    %v491 = vpop.f32.mrf.mxu0
    %v492 = vadd.f32 0.0, %v491
    %v493 = vpop.f32.mrf.mxu0
    %v494 = vpop.f32.mrf.mxu0
    %v495 = vadd.f32 0.0, %v494
    %v496 = vpop.f32.mrf.mxu0
    %497 = vmatprep.mubr.bf16.mxu0 0
    %498 = vmatmul.mubr.bf16.gmra.mxu0 %v358
    %v499 = vpop.f32.mrf.mxu0
    %v500 = vadd.f32 0.0, %v499
    %v501 = vpop.f32.mrf.mxu0
    %v502 = vpop.f32.mrf.mxu0
    %v503 = vadd.f32 0.0, %v502
    %v504 = vpop.f32.mrf.mxu0
    %505 = vmatprep.mubr.bf16.mxu0 0
    %506 = vmatmul.mubr.bf16.gmra.mxu0 %v359
    %v507 = vpop.f32.mrf.mxu0
    %v508 = vadd.f32 0.0, %v507
    %v509 = vpop.f32.mrf.mxu0
    %v510 = vpop.f32.mrf.mxu0
    %v511 = vadd.f32 0.0, %v510
    %v512 = vpop.f32.mrf.mxu0
    %513 = vmatprep.mubr.bf16.mxu0 0
    %514 = vmatmul.mubr.bf16.gmra.mxu0 %v360
    %v515 = vpop.f32.mrf.mxu0
    %v516 = vadd.f32 0.0, %v515
    %v517 = vpop.f32.mrf.mxu0
    %v518 = vpop.f32.mrf.mxu0
    %v519 = vadd.f32 0.0, %v518
    %v520 = vpop.f32.mrf.mxu0
    %521 = vdwg.mxu0
    %v522 = vpack.c.bf16 %v463, %v460
    %v523 = vpack.c.bf16 %v471, %v468
    %v524 = vpack.c.bf16 %v479, %v476
    %v525 = vpack.c.bf16 %v487, %v484
    %v526 = vpack.c.bf16 %v495, %v492
    %v527 = vpack.c.bf16 %v503, %v500
    %v528 = vpack.c.bf16 %v511, %v508
    %v529 = vpack.c.bf16 %v519, %v516
    %v530 = vld [vmem:[%s4] sm:$0x1]
    %v532 = vlaneseq
    %v533 = vshrl.u32 %v532, 7
    %v534 = vsub.s32 0, %v533
    %v535 = vrot.slane %v530, %v534
    %537 = vmatprep.subr.bf16.mxu0 0
    %538 = vmatpush1.bf16.msra.mxu0 %v529
    %539 = vmatprep.subr.bf16.mxu0 0
    %540 = vmatpush1.bf16.msra.mxu0 %v528
    %541 = vmatprep.subr.bf16.mxu0 0
    %542 = vmatpush1.bf16.msra.mxu0 %v527
    %543 = vmatprep.subr.bf16.mxu0 0
    %544 = vmatpush1.bf16.msra.mxu0 %v526
    %545 = vmatprep.subr.bf16.mxu0 0
    %546 = vmatpush1.bf16.msra.mxu0 %v525
    %547 = vmatprep.subr.bf16.mxu0 0
    %548 = vmatpush1.bf16.msra.mxu0 %v524
    %549 = vmatprep.subr.bf16.mxu0 0
    %550 = vmatpush1.bf16.msra.mxu0 %v523
    %551 = vmatprep.subr.bf16.mxu0 0
    %552 = vmatpush1.bf16.msra.mxu0 %v522
    %553 = vmatprep.subr.bf16.mxu0 0
    %554 = vmatpush2.bf16.msra.mxu0 0
    %555 = vmatprep.subr.bf16.mxu0 0
    %556 = vmatpush2.bf16.msra.mxu0 0
    %557 = vmatprep.subr.bf16.mxu0 0
    %558 = vmatpush2.bf16.msra.mxu0 0
    %559 = vmatprep.subr.bf16.mxu0 0
    %560 = vmatpush2.bf16.msra.mxu0 0
    %561 = vmatprep.subr.bf16.mxu0 0
    %562 = vmatpush2.bf16.msra.mxu0 0
    %563 = vmatprep.subr.bf16.mxu0 0
    %564 = vmatpush2.bf16.msra.mxu0 0
    %565 = vmatprep.subr.bf16.mxu0 0
    %566 = vmatpush2.bf16.msra.mxu0 0
    %567 = vmatprep.subr.bf16.mxu0 0
    %568 = vmatpush2.bf16.msra.mxu0 0
    %569 = vmatprep.mubr.bf16.mxu0 0
    %570 = vmatmul.mubr.bf16.gmra.mxu0 %v176
    %v571 = vpop.f32.mrf.mxu0
    %v572 = vadd.f32 %v535, %v571
    %v573 = vpop.f32.mrf.mxu0
    %v574 = vpop.f32.mrf.mxu0
    %v575 = vadd.f32 %v535, %v574
    %v576 = vpop.f32.mrf.mxu0
    %577 = vmatprep.mubr.bf16.mxu0 0
    %578 = vmatmul.mubr.bf16.gmra.mxu0 %v177
    %v579 = vpop.f32.mrf.mxu0
    %v580 = vadd.f32 %v535, %v579
    %v581 = vpop.f32.mrf.mxu0
    %v582 = vpop.f32.mrf.mxu0
    %v583 = vadd.f32 %v535, %v582
    %v584 = vpop.f32.mrf.mxu0
    %585 = vmatprep.mubr.bf16.mxu0 0
    %586 = vmatmul.mubr.bf16.gmra.mxu0 %v178
    %v587 = vpop.f32.mrf.mxu0
    %v588 = vadd.f32 %v535, %v587
    %v589 = vpop.f32.mrf.mxu0
    %v590 = vpop.f32.mrf.mxu0
    %v591 = vadd.f32 %v535, %v590
    %v592 = vpop.f32.mrf.mxu0
    %593 = vmatprep.mubr.bf16.mxu0 0
    %594 = vmatmul.mubr.bf16.gmra.mxu0 %v179
    %v595 = vpop.f32.mrf.mxu0
    %v596 = vadd.f32 %v535, %v595
    %v597 = vpop.f32.mrf.mxu0
    %v598 = vpop.f32.mrf.mxu0
    %v599 = vadd.f32 %v535, %v598
    %v600 = vpop.f32.mrf.mxu0
    %601 = vmatprep.mubr.bf16.mxu0 0
    %602 = vmatmul.mubr.bf16.gmra.mxu0 %v180
    %v603 = vpop.f32.mrf.mxu0
    %v604 = vadd.f32 %v535, %v603
    %v605 = vpop.f32.mrf.mxu0
    %v606 = vpop.f32.mrf.mxu0
    %v607 = vadd.f32 %v535, %v606
    %v608 = vpop.f32.mrf.mxu0
    %609 = vmatprep.mubr.bf16.mxu0 0
    %610 = vmatmul.mubr.bf16.gmra.mxu0 %v181
    %v611 = vpop.f32.mrf.mxu0
    %v612 = vadd.f32 %v535, %v611
    %v613 = vpop.f32.mrf.mxu0
    %v614 = vpop.f32.mrf.mxu0
    %v615 = vadd.f32 %v535, %v614
    %v616 = vpop.f32.mrf.mxu0
    %617 = vmatprep.mubr.bf16.mxu0 0
    %618 = vmatmul.mubr.bf16.gmra.mxu0 %v182
    %v619 = vpop.f32.mrf.mxu0
    %v620 = vadd.f32 %v535, %v619
    %v621 = vpop.f32.mrf.mxu0
    %v622 = vpop.f32.mrf.mxu0
    %v623 = vadd.f32 %v535, %v622
    %v624 = vpop.f32.mrf.mxu0
    %625 = vmatprep.mubr.bf16.mxu0 0
    %626 = vmatmul.mubr.bf16.gmra.mxu0 %v183
    %v627 = vpop.f32.mrf.mxu0
    %v628 = vadd.f32 %v535, %v627
    %v629 = vpop.f32.mrf.mxu0
    %v630 = vpop.f32.mrf.mxu0
    %v631 = vadd.f32 %v535, %v630
    %v632 = vpop.f32.mrf.mxu0
    %633 = vdwg.mxu0
    %v634 = vmax.f32 %v572, 0.0
    %v635 = vmax.f32 %v575, 0.0
    %v636 = vmax.f32 %v580, 0.0
    %v637 = vmax.f32 %v583, 0.0
    %v638 = vmax.f32 %v588, 0.0
    %v639 = vmax.f32 %v591, 0.0
    %v640 = vmax.f32 %v596, 0.0
    %v641 = vmax.f32 %v599, 0.0
    %v642 = vmax.f32 %v604, 0.0
    %v643 = vmax.f32 %v607, 0.0
    %v644 = vmax.f32 %v612, 0.0
    %v645 = vmax.f32 %v615, 0.0
    %v646 = vmax.f32 %v620, 0.0
    %v647 = vmax.f32 %v623, 0.0
    %v648 = vmax.f32 %v628, 0.0
    %v649 = vmax.f32 %v631, 0.0
    %v650 = vpack.c.bf16 %v635, %v634
    %v651 = vpack.c.bf16 %v637, %v636
    %v652 = vpack.c.bf16 %v639, %v638
    %v653 = vpack.c.bf16 %v641, %v640
    %v654 = vpack.c.bf16 %v643, %v642
    %v655 = vpack.c.bf16 %v645, %v644
    %v656 = vpack.c.bf16 %v647, %v646
    %v657 = vpack.c.bf16 %v649, %v648
    %v658 = vld [vmem:[#allocation8] sm:$0xf]
    %v659 = vld [vmem:[#allocation8 + $0x4] sm:$0xf]
    %v660 = vld [vmem:[#allocation8 + $0x8] sm:$0xf]
    %v661 = vld [vmem:[#allocation8 + $0xc] sm:$0xf]
    %v662 = vld [vmem:[#allocation8 + $0x10] sm:$0xf]
    %v663 = vld [vmem:[#allocation8 + $0x14] sm:$0xf]
    %v664 = vld [vmem:[#allocation8 + $0x18] sm:$0xf]
    %v665 = vld [vmem:[#allocation8 + $0x1c] sm:$0xf]
    %v666 = vld [vmem:[#allocation8 + $0x20] sm:$0xf]
    %v667 = vld [vmem:[#allocation8 + $0x24] sm:$0xf]
    %v668 = vld [vmem:[#allocation8 + $0x28] sm:$0xf]
    %v669 = vld [vmem:[#allocation8 + $0x2c] sm:$0xf]
    %v670 = vld [vmem:[#allocation8 + $0x30] sm:$0xf]
    %v671 = vld [vmem:[#allocation8 + $0x34] sm:$0xf]
    %v672 = vld [vmem:[#allocation8 + $0x38] sm:$0xf]
    %v673 = vld [vmem:[#allocation8 + $0x3c] sm:$0xf]
    %v690 = vunpack.c.l.b16 %v658
    %v691 = vunpack.c.l.b16 %v659
    %v692 = vunpack.c.l.b16 %v660
    %v693 = vunpack.c.l.b16 %v661
    %v694 = vunpack.c.l.b16 %v662
    %v695 = vunpack.c.l.b16 %v663
    %v696 = vunpack.c.l.b16 %v664
    %v697 = vunpack.c.l.b16 %v665
    %v698 = vunpack.c.l.b16 %v666
    %v699 = vunpack.c.l.b16 %v667
    %v700 = vunpack.c.l.b16 %v668
    %v701 = vunpack.c.l.b16 %v669
    %v702 = vunpack.c.l.b16 %v670
    %v703 = vunpack.c.l.b16 %v671
    %v704 = vunpack.c.l.b16 %v672
    %v705 = vunpack.c.l.b16 %v673
    %v706 = vpack.c.b16 %v691, %v690
    %v707 = vpack.c.b16 %v693, %v692
    %v708 = vpack.c.b16 %v695, %v694
    %v709 = vpack.c.b16 %v697, %v696
    %v710 = vpack.c.b16 %v699, %v698
    %v711 = vpack.c.b16 %v701, %v700
    %v712 = vpack.c.b16 %v703, %v702
    %v713 = vpack.c.b16 %v705, %v704
    %722 = vmatprep.subr.bf16.mxu0 0
    %723 = vmatpush1.bf16.msra.mxu0 %v713
    %724 = vmatprep.subr.bf16.mxu0 0
    %725 = vmatpush1.bf16.msra.mxu0 %v712
    %726 = vmatprep.subr.bf16.mxu0 0
    %727 = vmatpush1.bf16.msra.mxu0 %v711
    %728 = vmatprep.subr.bf16.mxu0 0
    %729 = vmatpush1.bf16.msra.mxu0 %v710
    %730 = vmatprep.subr.bf16.mxu0 0
    %731 = vmatpush1.bf16.msra.mxu0 %v709
    %732 = vmatprep.subr.bf16.mxu0 0
    %733 = vmatpush1.bf16.msra.mxu0 %v708
    %734 = vmatprep.subr.bf16.mxu0 0
    %735 = vmatpush1.bf16.msra.mxu0 %v707
    %736 = vmatprep.subr.bf16.mxu0 0
    %737 = vmatpush1.bf16.msra.mxu0 %v706
    %738 = vmatprep.subr.bf16.mxu0 0
    %739 = vmatpush2.bf16.msra.mxu0 0
    %740 = vmatprep.subr.bf16.mxu0 0
    %741 = vmatpush2.bf16.msra.mxu0 0
    %742 = vmatprep.subr.bf16.mxu0 0
    %743 = vmatpush2.bf16.msra.mxu0 0
    %744 = vmatprep.subr.bf16.mxu0 0
    %745 = vmatpush2.bf16.msra.mxu0 0
    %746 = vmatprep.subr.bf16.mxu0 0
    %747 = vmatpush2.bf16.msra.mxu0 0
    %748 = vmatprep.subr.bf16.mxu0 0
    %749 = vmatpush2.bf16.msra.mxu0 0
    %750 = vmatprep.subr.bf16.mxu0 0
    %751 = vmatpush2.bf16.msra.mxu0 0
    %752 = vmatprep.subr.bf16.mxu0 0
    %753 = vmatpush2.bf16.msra.mxu0 0
    %754 = vmatprep.mubr.bf16.mxu0 0
    %755 = vmatmul.mubr.bf16.gmra.mxu0 %v650
    %v756 = vpop.f32.mrf.mxu0
    %v757 = vadd.f32 0.0, %v756
    %v758 = vpop.f32.mrf.mxu0
    %v759 = vpop.f32.mrf.mxu0
    %v760 = vadd.f32 0.0, %v759
    %v761 = vpop.f32.mrf.mxu0
    %762 = vmatprep.mubr.bf16.mxu0 0
    %763 = vmatmul.mubr.bf16.gmra.mxu0 %v651
    %v764 = vpop.f32.mrf.mxu0
    %v765 = vadd.f32 0.0, %v764
    %v766 = vpop.f32.mrf.mxu0
    %v767 = vpop.f32.mrf.mxu0
    %v768 = vadd.f32 0.0, %v767
    %v769 = vpop.f32.mrf.mxu0
    %770 = vmatprep.mubr.bf16.mxu0 0
    %771 = vmatmul.mubr.bf16.gmra.mxu0 %v652
    %v772 = vpop.f32.mrf.mxu0
    %v773 = vadd.f32 0.0, %v772
    %v774 = vpop.f32.mrf.mxu0
    %v775 = vpop.f32.mrf.mxu0
    %v776 = vadd.f32 0.0, %v775
    %v777 = vpop.f32.mrf.mxu0
    %778 = vmatprep.mubr.bf16.mxu0 0
    %779 = vmatmul.mubr.bf16.gmra.mxu0 %v653
    %v780 = vpop.f32.mrf.mxu0
    %v781 = vadd.f32 0.0, %v780
    %v782 = vpop.f32.mrf.mxu0
    %v783 = vpop.f32.mrf.mxu0
    %v784 = vadd.f32 0.0, %v783
    %v785 = vpop.f32.mrf.mxu0
    %786 = vmatprep.mubr.bf16.mxu0 0
    %787 = vmatmul.mubr.bf16.gmra.mxu0 %v654
    %v788 = vpop.f32.mrf.mxu0
    %v789 = vadd.f32 0.0, %v788
    %v790 = vpop.f32.mrf.mxu0
    %v791 = vpop.f32.mrf.mxu0
    %v792 = vadd.f32 0.0, %v791
    %v793 = vpop.f32.mrf.mxu0
    %794 = vmatprep.mubr.bf16.mxu0 0
    %795 = vmatmul.mubr.bf16.gmra.mxu0 %v655
    %v796 = vpop.f32.mrf.mxu0
    %v797 = vadd.f32 0.0, %v796
    %v798 = vpop.f32.mrf.mxu0
    %v799 = vpop.f32.mrf.mxu0
    %v800 = vadd.f32 0.0, %v799
    %v801 = vpop.f32.mrf.mxu0
    %802 = vmatprep.mubr.bf16.mxu0 0
    %803 = vmatmul.mubr.bf16.gmra.mxu0 %v656
    %v804 = vpop.f32.mrf.mxu0
    %v805 = vadd.f32 0.0, %v804
    %v806 = vpop.f32.mrf.mxu0
    %v807 = vpop.f32.mrf.mxu0
    %v808 = vadd.f32 0.0, %v807
    %v809 = vpop.f32.mrf.mxu0
    %810 = vmatprep.mubr.bf16.mxu0 0
    %811 = vmatmul.mubr.bf16.gmra.mxu0 %v657
    %v812 = vpop.f32.mrf.mxu0
    %v813 = vadd.f32 0.0, %v812
    %v814 = vpop.f32.mrf.mxu0
    %v815 = vpop.f32.mrf.mxu0
    %v816 = vadd.f32 0.0, %v815
    %v817 = vpop.f32.mrf.mxu0
    %818 = vdwg.mxu0
    %v819 = vpack.c.bf16 %v760, %v757
    %v820 = vpack.c.bf16 %v768, %v765
    %v821 = vpack.c.bf16 %v776, %v773
    %v822 = vpack.c.bf16 %v784, %v781
    %v823 = vpack.c.bf16 %v792, %v789
    %v824 = vpack.c.bf16 %v800, %v797
    %v825 = vpack.c.bf16 %v808, %v805
    %v826 = vpack.c.bf16 %v816, %v813
    %v827 = vld [vmem:[%s6] sm:$0x1]
    %v829 = vlaneseq
    %v830 = vshrl.u32 %v829, 7
    %v831 = vsub.s32 0, %v830
    %v832 = vrot.slane %v827, %v831
    %834 = vmatprep.subr.bf16.mxu0 0
    %835 = vmatpush1.bf16.msra.mxu0 %v826
    %836 = vmatprep.subr.bf16.mxu0 0
    %837 = vmatpush1.bf16.msra.mxu0 %v825
    %838 = vmatprep.subr.bf16.mxu0 0
    %839 = vmatpush1.bf16.msra.mxu0 %v824
    %840 = vmatprep.subr.bf16.mxu0 0
    %841 = vmatpush1.bf16.msra.mxu0 %v823
    %842 = vmatprep.subr.bf16.mxu0 0
    %843 = vmatpush1.bf16.msra.mxu0 %v822
    %844 = vmatprep.subr.bf16.mxu0 0
    %845 = vmatpush1.bf16.msra.mxu0 %v821
    %846 = vmatprep.subr.bf16.mxu0 0
    %847 = vmatpush1.bf16.msra.mxu0 %v820
    %848 = vmatprep.subr.bf16.mxu0 0
    %849 = vmatpush1.bf16.msra.mxu0 %v819
    %850 = vmatprep.subr.bf16.mxu0 0
    %851 = vmatpush2.bf16.msra.mxu0 0
    %852 = vmatprep.subr.bf16.mxu0 0
    %853 = vmatpush2.bf16.msra.mxu0 0
    %854 = vmatprep.subr.bf16.mxu0 0
    %855 = vmatpush2.bf16.msra.mxu0 0
    %856 = vmatprep.subr.bf16.mxu0 0
    %857 = vmatpush2.bf16.msra.mxu0 0
    %858 = vmatprep.subr.bf16.mxu0 0
    %859 = vmatpush2.bf16.msra.mxu0 0
    %860 = vmatprep.subr.bf16.mxu0 0
    %861 = vmatpush2.bf16.msra.mxu0 0
    %862 = vmatprep.subr.bf16.mxu0 0
    %863 = vmatpush2.bf16.msra.mxu0 0
    %864 = vmatprep.subr.bf16.mxu0 0
    %865 = vmatpush2.bf16.msra.mxu0 0
    %866 = vmatprep.mubr.bf16.mxu0 0
    %867 = vmatmul.mubr.bf16.gmra.mxu0 %v176
    %v868 = vpop.f32.mrf.mxu0
    %v869 = vadd.f32 %v832, %v868
    %v870 = vpop.f32.mrf.mxu0
    %v871 = vpop.f32.mrf.mxu0
    %v872 = vadd.f32 %v832, %v871
    %v873 = vpop.f32.mrf.mxu0
    %874 = vmatprep.mubr.bf16.mxu0 0
    %875 = vmatmul.mubr.bf16.gmra.mxu0 %v177
    %v876 = vpop.f32.mrf.mxu0
    %v877 = vadd.f32 %v832, %v876
    %v878 = vpop.f32.mrf.mxu0
    %v879 = vpop.f32.mrf.mxu0
    %v880 = vadd.f32 %v832, %v879
    %v881 = vpop.f32.mrf.mxu0
    %882 = vmatprep.mubr.bf16.mxu0 0
    %883 = vmatmul.mubr.bf16.gmra.mxu0 %v178
    %v884 = vpop.f32.mrf.mxu0
    %v885 = vadd.f32 %v832, %v884
    %v886 = vpop.f32.mrf.mxu0
    %v887 = vpop.f32.mrf.mxu0
    %v888 = vadd.f32 %v832, %v887
    %v889 = vpop.f32.mrf.mxu0
    %890 = vmatprep.mubr.bf16.mxu0 0
    %891 = vmatmul.mubr.bf16.gmra.mxu0 %v179
    %v892 = vpop.f32.mrf.mxu0
    %v893 = vadd.f32 %v832, %v892
    %v894 = vpop.f32.mrf.mxu0
    %v895 = vpop.f32.mrf.mxu0
    %v896 = vadd.f32 %v832, %v895
    %v897 = vpop.f32.mrf.mxu0
    %898 = vmatprep.mubr.bf16.mxu0 0
    %899 = vmatmul.mubr.bf16.gmra.mxu0 %v180
    %v900 = vpop.f32.mrf.mxu0
    %v901 = vadd.f32 %v832, %v900
    %v902 = vpop.f32.mrf.mxu0
    %v903 = vpop.f32.mrf.mxu0
    %v904 = vadd.f32 %v832, %v903
    %v905 = vpop.f32.mrf.mxu0
    %906 = vmatprep.mubr.bf16.mxu0 0
    %907 = vmatmul.mubr.bf16.gmra.mxu0 %v181
    %v908 = vpop.f32.mrf.mxu0
    %v909 = vadd.f32 %v832, %v908
    %v910 = vpop.f32.mrf.mxu0
    %v911 = vpop.f32.mrf.mxu0
    %v912 = vadd.f32 %v832, %v911
    %v913 = vpop.f32.mrf.mxu0
    %914 = vmatprep.mubr.bf16.mxu0 0
    %915 = vmatmul.mubr.bf16.gmra.mxu0 %v182
    %v916 = vpop.f32.mrf.mxu0
    %v917 = vadd.f32 %v832, %v916
    %v918 = vpop.f32.mrf.mxu0
    %v919 = vpop.f32.mrf.mxu0
    %v920 = vadd.f32 %v832, %v919
    %v921 = vpop.f32.mrf.mxu0
    %922 = vmatprep.mubr.bf16.mxu0 0
    %923 = vmatmul.mubr.bf16.gmra.mxu0 %v183
    %v924 = vpop.f32.mrf.mxu0
    %v925 = vadd.f32 %v832, %v924
    %v926 = vpop.f32.mrf.mxu0
    %v927 = vpop.f32.mrf.mxu0
    %v928 = vadd.f32 %v832, %v927
    %v929 = vpop.f32.mrf.mxu0
    %930 = vdwg.mxu0
    %v931 = vld [vmem:[%s7] sm:$0xff]
    %932 = vmatprep.subr.mxu0 0.0
    %933 = vmatpush1.msra.mxu0 %v928
    %934 = vmatprep.subr.mxu0 0.0
    %935 = vmatpush1.msra.mxu0 %v925
    %936 = vmatprep.subr.mxu0 0.0
    %937 = vmatpush1.msra.mxu0 %v920
    %938 = vmatprep.subr.mxu0 0.0
    %939 = vmatpush1.msra.mxu0 %v917
    %940 = vmatprep.subr.mxu0 0.0
    %941 = vmatpush1.msra.mxu0 %v912
    %942 = vmatprep.subr.mxu0 0.0
    %943 = vmatpush1.msra.mxu0 %v909
    %944 = vmatprep.subr.mxu0 0.0
    %945 = vmatpush1.msra.mxu0 %v904
    %946 = vmatprep.subr.mxu0 0.0
    %947 = vmatpush1.msra.mxu0 %v901
    %948 = vmatprep.subr.mxu0 0.0
    %949 = vmatpush1.msra.mxu0 %v896
    %950 = vmatprep.subr.mxu0 0.0
    %951 = vmatpush1.msra.mxu0 %v893
    %952 = vmatprep.subr.mxu0 0.0
    %953 = vmatpush1.msra.mxu0 %v888
    %954 = vmatprep.subr.mxu0 0.0
    %955 = vmatpush1.msra.mxu0 %v885
    %956 = vmatprep.subr.mxu0 0.0
    %957 = vmatpush1.msra.mxu0 %v880
    %958 = vmatprep.subr.mxu0 0.0
    %959 = vmatpush1.msra.mxu0 %v877
    %960 = vmatprep.subr.mxu0 0.0
    %961 = vmatpush1.msra.mxu0 %v872
    %962 = vmatprep.subr.mxu0 0.0
    %963 = vmatpush1.msra.mxu0 %v869
    %964 = vmatprep.subr.mxu0 0.0
    %965 = vmatpush2.msra.mxu0 0.0
    %966 = vmatprep.subr.mxu0 0.0
    %967 = vmatpush2.msra.mxu0 0.0
    %968 = vmatprep.subr.mxu0 0.0
    %969 = vmatpush2.msra.mxu0 0.0
    %970 = vmatprep.subr.mxu0 0.0
    %971 = vmatpush2.msra.mxu0 0.0
    %972 = vmatprep.subr.mxu0 0.0
    %973 = vmatpush2.msra.mxu0 0.0
    %974 = vmatprep.subr.mxu0 0.0
    %975 = vmatpush2.msra.mxu0 0.0
    %976 = vmatprep.subr.mxu0 0.0
    %977 = vmatpush2.msra.mxu0 0.0
    %978 = vmatprep.subr.mxu0 0.0
    %979 = vmatpush2.msra.mxu0 0.0
    %980 = vmatprep.subr.mxu0 0.0
    %981 = vmatpush2.msra.mxu0 0.0
    %982 = vmatprep.subr.mxu0 0.0
    %983 = vmatpush2.msra.mxu0 0.0
    %984 = vmatprep.subr.mxu0 0.0
    %985 = vmatpush2.msra.mxu0 0.0
    %986 = vmatprep.subr.mxu0 0.0
    %987 = vmatpush2.msra.mxu0 0.0
    %988 = vmatprep.subr.mxu0 0.0
    %989 = vmatpush2.msra.mxu0 0.0
    %990 = vmatprep.subr.mxu0 0.0
    %991 = vmatpush2.msra.mxu0 0.0
    %992 = vmatprep.subr.mxu0 0.0
    %993 = vmatpush2.msra.mxu0 0.0
    %994 = vmatprep.subr.mxu0 0.0
    %995 = vmatpush2.msra.mxu0 0.0
    %996 = vmatprep.mubr.f32.mxu0 0.0
    %997 = vmatmul.mubr.f32.gmra.mxu0 %v931
    %v998 = vpop.f32.mrf.mxu0
    %v999 = vadd.f32 0.0, %v998
    %v1000 = vpop.f32.mrf.mxu0
    %1001 = vdwg.mxu0
    %v1002 = vld [vmem:[#allocation10] sm:$0xff]
    %v1003 = vld [vmem:[#allocation10 + $0x8] sm:$0xff]
    %v1004 = vld [vmem:[#allocation10 + $0x10] sm:$0xff]
    %v1005 = vld [vmem:[#allocation10 + $0x18] sm:$0xff]
    %v1006 = vld [vmem:[#allocation10 + $0x20] sm:$0xff]
    %v1007 = vld [vmem:[#allocation10 + $0x28] sm:$0xff]
    %v1008 = vld [vmem:[#allocation10 + $0x30] sm:$0xff]
    %v1009 = vld [vmem:[#allocation10 + $0x38] sm:$0xff]
    %v1010 = vld [vmem:[#allocation10 + $0x40] sm:$0xff]
    %v1011 = vld [vmem:[#allocation10 + $0x48] sm:$0xff]
    %v1012 = vld [vmem:[#allocation10 + $0x50] sm:$0xff]
    %v1013 = vld [vmem:[#allocation10 + $0x58] sm:$0xff]
    %v1014 = vld [vmem:[#allocation10 + $0x60] sm:$0xff]
    %v1015 = vld [vmem:[#allocation10 + $0x68] sm:$0xff]
    %v1016 = vld [vmem:[#allocation10 + $0x70] sm:$0xff]
    %v1017 = vld [vmem:[#allocation10 + $0x78] sm:$0xff]
    %v1018 = vld [vmem:[%s9] sm:$0x1]
    %v1020 = vlaneseq
    %v1021 = vshrl.u32 %v1020, 7
    %v1022 = vsub.s32 0, %v1021
    %v1023 = vrot.slane %v1018, %v1022
    %1025 = vmatprep.subr.mxu0 0.0
    %1026 = vmatpush1.msra.mxu0 %v1017
    %1027 = vmatprep.subr.mxu0 0.0
    %1028 = vmatpush1.msra.mxu0 %v1016
    %1029 = vmatprep.subr.mxu0 0.0
    %1030 = vmatpush1.msra.mxu0 %v1015
    %1031 = vmatprep.subr.mxu0 0.0
    %1032 = vmatpush1.msra.mxu0 %v1014
    %1033 = vmatprep.subr.mxu0 0.0
    %1034 = vmatpush1.msra.mxu0 %v1013
    %1035 = vmatprep.subr.mxu0 0.0
    %1036 = vmatpush1.msra.mxu0 %v1012
    %1037 = vmatprep.subr.mxu0 0.0
    %1038 = vmatpush1.msra.mxu0 %v1011
    %1039 = vmatprep.subr.mxu0 0.0
    %1040 = vmatpush1.msra.mxu0 %v1010
    %1041 = vmatprep.subr.mxu0 0.0
    %1042 = vmatpush1.msra.mxu0 %v1009
    %1043 = vmatprep.subr.mxu0 0.0
    %1044 = vmatpush1.msra.mxu0 %v1008
    %1045 = vmatprep.subr.mxu0 0.0
    %1046 = vmatpush1.msra.mxu0 %v1007
    %1047 = vmatprep.subr.mxu0 0.0
    %1048 = vmatpush1.msra.mxu0 %v1006
    %1049 = vmatprep.subr.mxu0 0.0
    %1050 = vmatpush1.msra.mxu0 %v1005
    %1051 = vmatprep.subr.mxu0 0.0
    %1052 = vmatpush1.msra.mxu0 %v1004
    %1053 = vmatprep.subr.mxu0 0.0
    %1054 = vmatpush1.msra.mxu0 %v1003
    %1055 = vmatprep.subr.mxu0 0.0
    %1056 = vmatpush1.msra.mxu0 %v1002
    %1057 = vmatprep.subr.mxu0 0.0
    %1058 = vmatpush2.msra.mxu0 0.0
    %1059 = vmatprep.subr.mxu0 0.0
    %1060 = vmatpush2.msra.mxu0 0.0
    %1061 = vmatprep.subr.mxu0 0.0
    %1062 = vmatpush2.msra.mxu0 0.0
    %1063 = vmatprep.subr.mxu0 0.0
    %1064 = vmatpush2.msra.mxu0 0.0
    %1065 = vmatprep.subr.mxu0 0.0
    %1066 = vmatpush2.msra.mxu0 0.0
    %1067 = vmatprep.subr.mxu0 0.0
    %1068 = vmatpush2.msra.mxu0 0.0
    %1069 = vmatprep.subr.mxu0 0.0
    %1070 = vmatpush2.msra.mxu0 0.0
    %1071 = vmatprep.subr.mxu0 0.0
    %1072 = vmatpush2.msra.mxu0 0.0
    %1073 = vmatprep.subr.mxu0 0.0
    %1074 = vmatpush2.msra.mxu0 0.0
    %1075 = vmatprep.subr.mxu0 0.0
    %1076 = vmatpush2.msra.mxu0 0.0
    %1077 = vmatprep.subr.mxu0 0.0
    %1078 = vmatpush2.msra.mxu0 0.0
    %1079 = vmatprep.subr.mxu0 0.0
    %1080 = vmatpush2.msra.mxu0 0.0
    %1081 = vmatprep.subr.mxu0 0.0
    %1082 = vmatpush2.msra.mxu0 0.0
    %1083 = vmatprep.subr.mxu0 0.0
    %1084 = vmatpush2.msra.mxu0 0.0
    %1085 = vmatprep.subr.mxu0 0.0
    %1086 = vmatpush2.msra.mxu0 0.0
    %1087 = vmatprep.subr.mxu0 0.0
    %1088 = vmatpush2.msra.mxu0 0.0
    %1089 = vmatprep.mubr.f32.mxu0 0.0
    %1090 = vmatmul.mubr.f32.gmra.mxu0 %v999
    %v1091 = vpop.f32.mrf.mxu0
    %v1092 = vadd.f32 %v1023, %v1091
    %v1093 = vpop.f32.mrf.mxu0
    %1094 = vdwg.mxu0
    %1095 = vst [vmem:[#allocation11] sm:$0xff] %v1092
    // Predicated region
    $region62: #{tpu_custom_call.1} parent=1 // pred_check
      _
    $region63: #{tpu_custom_call.1} parent=1 // pred_check_branch
      %1097 = sbr.rel (0) target = $region65
    $region64: #{tpu_custom_call.1} parent=1 // pred_region
      %s1099 = ssub.s32 128, 128
      %1100 = vsyncadd [#allocation4], %s1099
      %s1102 = sshll.u32 [#allocation11], 4
      %s1103 = int_to_ptr.vmem [resolvable:$true] %s1102
      %1105 = dma.vmem_to_hbm [thread:$0]  %s1103, 128, %s10, [#allocation4]
    $region65: #{tpu_custom_call.1} parent=1 // pred_fallthru
      _
    // Predicated region
    $region66: #{tpu_custom_call.1} parent=1 // pred_check
      _
    $region67: #{tpu_custom_call.1} parent=1 // pred_check_branch
      %1107 = sbr.rel (0) target = $region69
    $region68: #{tpu_custom_call.1} parent=1 // pred_region
      %1108 = dma.done [#allocation4], 128
    $region69: #{tpu_custom_call.1} parent=1 // pred_fallthru
      _
    %1109 = vsyncpa [#allocation3], 1
    %1110 = vsyncpa [#allocation6], 1
    %1111 = vsyncpa [#allocation9], 1
    %1112 = vsyncpa [#allocation4], 1

</llo_original>
